<compile_context>
chip_gen: v6e
topology: v6e:2x2x1
jax: 0.10.0
libtpu: 0.0.40
codegen_flags: <defaults>
</compile_context>

<pallas_src>
import numpy as np
import jax
import jax.numpy as jnp
from jax.experimental import pallas as pl
from jax.experimental.pallas import tpu as pltpu

# ----- config (small, consistent with the module's __init__ signature) -----
N_BLOCKS = 2
INPUT_SIZE = 8
HIDDEN_SIZE = 32
N_HIDDEN = 1
BATCH = 8            # must be > 1 (unbiased batch variance divides by BATCH-1)
BN_EPS = 1e-5

H2 = 2 * HIDDEN_SIZE           # fused s|t hidden width
D2 = 2 * INPUT_SIZE            # fused s|t output width
VEC_LANES = 128                # lane-dense slab width

# ----- single parameter slab layout (rows, 128) f32, per block -----
# [ W0 fused (D rows, 2H lanes) ]
# [ Wh fused block-diag (N_HIDDEN * 2H rows, 2H lanes) ]
# [ Wo fused heads [sWo | tWo] (2H rows, 2D lanes) ]
# [ vec rows (8 rows, sublane-aligned): biases / mask / BN params ]
OFF_W0 = 0
OFF_WH = OFF_W0 + INPUT_SIZE
OFF_WO = OFF_WH + N_HIDDEN * H2
OFF_VEC = OFF_WO + H2

# rows inside the per-block vec group
R_B0 = 0                        # fused first-layer bias      (2H lanes)
R_BH = 1                        # fused hidden biases         (N_HIDDEN rows, 2H lanes)
R_BO = 1 + N_HIDDEN             # fused output bias [sbo|tbo] (2D lanes)
R_MASK = 2 + N_HIDDEN           # coupling mask               (D lanes)
R_LG = 3 + N_HIDDEN             # BatchNorm log_gamma         (D lanes)
R_GAMMA = 4 + N_HIDDEN          # exp(log_gamma), precomputed (D lanes)
R_BETA = 5 + N_HIDDEN           # BatchNorm beta              (D lanes)
VEC_ROWS = ((6 + N_HIDDEN + 7) // 8) * 8          # -> 8: one unmasked (8,128) vld

ROWS_PER_BLOCK = OFF_VEC + VEC_ROWS               # 8 + 64 + 64 + 8 = 144
TOTAL_ROWS = N_BLOCKS * ROWS_PER_BLOCK            # 288


# ----------------------------- Pallas kernel ------------------------------
def realnvp_kernel(x_ref, p_ref, out_ref):
    x = x_ref[...]                                  # (B, D) f32
    batch = x.shape[0]
    sum_lad = jnp.zeros_like(x)

    # Fused nonlinearity selector: lanes [0, H) belong to the s-net (tanh),
    # lanes [H, 2H) to the t-net (ReLU).  Hoisted out of the block loop.
    lane = jax.lax.broadcasted_iota(jnp.int32, (batch, H2), 1)
    is_s_lane = lane < HIDDEN_SIZE

    def fused_act(h):
        return jnp.where(is_s_lane, jnp.tanh(h), jnp.maximum(h, 0.0))

    for blk in range(N_BLOCKS):                     # static unroll over flow blocks
        base = blk * ROWS_PER_BLOCK

        # ----- weights (static slices of the single parameter slab) -----
        w0 = p_ref[base + OFF_W0: base + OFF_W0 + INPUT_SIZE, 0:H2]     # (D, 2H)
        wo = p_ref[base + OFF_WO: base + OFF_WO + H2, 0:D2]             # (2H, 2D)

        # ----- all per-block vector params with ONE unmasked (8,128) load -----
        v = p_ref[base + OFF_VEC: base + OFF_VEC + VEC_ROWS, :]         # (8, 128)
        b0 = v[R_B0:R_B0 + 1, 0:H2]
        bo = v[R_BO:R_BO + 1, 0:D2]
        mask = v[R_MASK:R_MASK + 1, 0:INPUT_SIZE]
        lg = v[R_LG:R_LG + 1, 0:INPUT_SIZE]
        gamma = v[R_GAMMA:R_GAMMA + 1, 0:INPUT_SIZE]                    # exp(lg), host-side
        beta = v[R_BETA:R_BETA + 1, 0:INPUT_SIZE]

        one_m = 1.0 - mask
        mx = x * mask

        # ----- fused s|t first layer: (B, D) @ (D, 2H) on the MXU -----
        h = jnp.dot(mx, w0, preferred_element_type=jnp.float32) + b0

        # ----- fused hidden layers: block-diag(sWh, tWh) (2H, 2H) -----
        for j in range(N_HIDDEN):
            rw = base + OFF_WH + j * H2
            wh = p_ref[rw: rw + H2, 0:H2]
            bh = v[R_BH + j:R_BH + j + 1, 0:H2]
            h = jnp.dot(fused_act(h), wh, preferred_element_type=jnp.float32) + bh

        # ----- fused output heads: one (B, 2H) @ (2H, 2D) dot, lanes [0:D]=s, [D:2D]=t -----
        st = jnp.dot(fused_act(h), wo, preferred_element_type=jnp.float32) + bo
        s = st[:, 0:INPUT_SIZE]
        t = st[:, INPUT_SIZE:D2]

        # ----- coupling transform -----
        u = mx + one_m * (x - t) * jnp.exp(-s)
        sum_lad = sum_lad + (-one_m * s)
        x = u

        # ----- BatchNorm flow layer (training-mode batch stats, unbiased var) -----
        mean = jnp.mean(x, axis=0, keepdims=True)                              # (1, D)
        var = jnp.sum((x - mean) ** 2, axis=0, keepdims=True) / (batch - 1)    # (1, D)
        inv = jax.lax.rsqrt(var + BN_EPS)                                      # EUP
        x = gamma * ((x - mean) * inv) + beta
        sum_lad = sum_lad + (lg - 0.5 * jnp.log(var + BN_EPS))

    # lane-dense (B, 128) output slab: [u | sum_log_abs_det | zero pad].
    # Direct sub-writes (no jnp.concatenate lane shifts on the epilogue).
    out_ref[...] = jnp.zeros_like(out_ref)
    out_ref[:, 0:INPUT_SIZE] = x
    out_ref[:, INPUT_SIZE:D2] = sum_lad


def realnvp_forward(x, param_slab):
    assert x.shape[0] > 1, "unbiased batch variance requires batch > 1"
    vmem = pl.BlockSpec(memory_space=pltpu.MemorySpace.VMEM)
    out = pl.pallas_call(
        realnvp_kernel,
        out_shape=jax.ShapeDtypeStruct((x.shape[0], VEC_LANES), jnp.float32),
        in_specs=[vmem, vmem],
        out_specs=vmem,
    )(x, param_slab)
    return out[:, :INPUT_SIZE], out[:, INPUT_SIZE:D2]


# ------------------------- parameter initialization -------------------------
def init_params(key):
    D, H = INPUT_SIZE, HIDDEN_SIZE

    def lin(k, fan_in, shape):
        bound = 1.0 / np.sqrt(fan_in)
        return jax.random.uniform(k, shape, jnp.float32, -bound, bound)

    ks = jax.random.split(key, 12)
    params = dict(
        sW0=lin(ks[0], D, (N_BLOCKS, D, H)),
        sb0=lin(ks[1], D, (N_BLOCKS, H)),
        sWh=lin(ks[2], H, (N_BLOCKS * N_HIDDEN, H, H)),
        sbh=lin(ks[3], H, (N_BLOCKS * N_HIDDEN, H)),
        sWo=lin(ks[4], H, (N_BLOCKS, H, D)),
        sbo=lin(ks[5], H, (N_BLOCKS, D)),
        tW0=lin(ks[6], D, (N_BLOCKS, D, H)),
        tb0=lin(ks[7], D, (N_BLOCKS, H)),
        tWh=lin(ks[8], H, (N_BLOCKS * N_HIDDEN, H, H)),
        tbh=lin(ks[9], H, (N_BLOCKS * N_HIDDEN, H)),
        tWo=lin(ks[10], H, (N_BLOCKS, H, D)),
        tbo=lin(ks[11], H, (N_BLOCKS, D)),
        log_gamma=jnp.zeros((N_BLOCKS, D), jnp.float32),   # BatchNorm init
        beta=jnp.zeros((N_BLOCKS, D), jnp.float32),
    )
    # mask = arange(D) % 2, flipped (1 - mask) each block
    m0 = (jnp.arange(D) % 2).astype(jnp.float32)
    masks = [m0 if (i % 2 == 0) else (1.0 - m0) for i in range(N_BLOCKS)]
    params["mask"] = jnp.stack(masks, axis=0)
    return params


def pack_params(p):
    """Pack all parameters into one lane-dense (TOTAL_ROWS, 128) f32 slab."""
    D, H = INPUT_SIZE, HIDDEN_SIZE
    slab = np.zeros((TOTAL_ROWS, VEC_LANES), np.float32)

    for blk in range(N_BLOCKS):
        r = blk * ROWS_PER_BLOCK

        # fused first layer: [sW0 | tW0] -> rows OFF_W0..+D, lanes 0..2H
        slab[r + OFF_W0: r + OFF_W0 + D, 0:H] = np.asarray(p["sW0"][blk])
        slab[r + OFF_W0: r + OFF_W0 + D, H:H2] = np.asarray(p["tW0"][blk])

        # fused hidden layers: block-diag(sWh, tWh) -> 2H rows each
        for j in range(N_HIDDEN):
            idx = blk * N_HIDDEN + j
            rw = r + OFF_WH + j * H2
            slab[rw: rw + H, 0:H] = np.asarray(p["sWh"][idx])
            slab[rw + H: rw + H2, H:H2] = np.asarray(p["tWh"][idx])

        # fused output heads: [sWo -> lanes 0:D from rows 0:H | tWo -> lanes D:2D from rows H:2H]
        rw = r + OFF_WO
        slab[rw: rw + H, 0:D] = np.asarray(p["sWo"][blk])
        slab[rw + H: rw + H2, D:D2] = np.asarray(p["tWo"][blk])

        # vec group: biases, mask, BN params (one (8,128) tile)
        rv = r + OFF_VEC
        slab[rv + R_B0, 0:H] = np.asarray(p["sb0"][blk])
        slab[rv + R_B0, H:H2] = np.asarray(p["tb0"][blk])
        for j in range(N_HIDDEN):
            idx = blk * N_HIDDEN + j
            slab[rv + R_BH + j, 0:H] = np.asarray(p["sbh"][idx])
            slab[rv + R_BH + j, H:H2] = np.asarray(p["tbh"][idx])
        slab[rv + R_BO, 0:D] = np.asarray(p["sbo"][blk])
        slab[rv + R_BO, D:D2] = np.asarray(p["tbo"][blk])
        slab[rv + R_MASK, 0:D] = np.asarray(p["mask"][blk])
        slab[rv + R_LG, 0:D] = np.asarray(p["log_gamma"][blk])
        slab[rv + R_GAMMA, 0:D] = np.exp(np.asarray(p["log_gamma"][blk]))
        slab[rv + R_BETA, 0:D] = np.asarray(p["beta"][blk])

    return jnp.asarray(slab, jnp.float32)


# ----------------------- pure-JAX reference (for check) ---------------------
def realnvp_ref(x, p):
    sum_lad = jnp.zeros_like(x)
    for blk in range(N_BLOCKS):
        mask = p["mask"][blk][None, :]
        one_m = 1.0 - mask
        mx = x * mask
        h = mx @ p["sW0"][blk] + p["sb0"][blk]
        for j in range(N_HIDDEN):
            idx = blk * N_HIDDEN + j
            h = jnp.tanh(h) @ p["sWh"][idx] + p["sbh"][idx]
        s = jnp.tanh(h) @ p["sWo"][blk] + p["sbo"][blk]
        g = mx @ p["tW0"][blk] + p["tb0"][blk]
        for j in range(N_HIDDEN):
            idx = blk * N_HIDDEN + j
            g = jnp.maximum(g, 0.0) @ p["tWh"][idx] + p["tbh"][idx]
        t = jnp.maximum(g, 0.0) @ p["tWo"][blk] + p["tbo"][blk]
        x = mx + one_m * (x - t) * jnp.exp(-s)
        sum_lad = sum_lad + (-one_m * s)
        mean = jnp.mean(x, axis=0, keepdims=True)
        var = jnp.var(x, axis=0, ddof=1, keepdims=True)
        x_hat = (x - mean) / jnp.sqrt(var + BN_EPS)
        x = jnp.exp(p["log_gamma"][blk]) * x_hat + p["beta"][blk]
        sum_lad = sum_lad + (p["log_gamma"][blk][None, :] - 0.5 * jnp.log(var + BN_EPS))
    return x, sum_lad


# ---------------------------------- main -----------------------------------
if __name__ == "__main__":
    key = jax.random.PRNGKey(0)
    k_param, k_x = jax.random.split(key)
    params = init_params(k_param)
    param_slab = pack_params(params)
    x = jax.random.normal(k_x, (BATCH, INPUT_SIZE), jnp.float32)

    u, sum_lad = realnvp_forward(x, param_slab)
    u = jax.block_until_ready(u)
    sum_lad = jax.block_until_ready(sum_lad)

    u_ref, lad_ref = realnvp_ref(x, params)
    # f32 matmul operands (f32 accumulation) -> tight tolerance vs. the f32 reference.
    np.testing.assert_allclose(np.asarray(u), np.asarray(u_ref), rtol=1e-4, atol=1e-4)
    np.testing.assert_allclose(np.asarray(sum_lad), np.asarray(lad_ref), rtol=1e-4, atol=1e-4)

    assert u.shape == (BATCH, INPUT_SIZE) and sum_lad.shape == (BATCH, INPUT_SIZE)
    print("KERNEL_OK")
</pallas_src>

<mosaic_0001>
module attributes {stable_mosaic.version = 11 : i64} {
  func.func @realnvp_kernel(%arg0: memref<8x8xf32, #tpu.memory_space<vmem>>, %arg1: memref<288x128xf32, #tpu.memory_space<vmem>>, %arg2: memref<8x128xf32, #tpu.memory_space<vmem>>) attributes {dimension_semantics = [], scalar_prefetch = 0 : i64, scratch_operands = 0 : i64, tpu.core_type = #tpu.core_type<tc>} {
    %c0 = arith.constant 0 : index
    %c0_0 = arith.constant 0 : index
    %0 = vector.load %arg0[%c0, %c0_0] : memref<8x8xf32, #tpu.memory_space<vmem>>, vector<8x8xf32>
    %cst = arith.constant 0.000000e+00 : f32
    %1 = vector.broadcast %cst : f32 to vector<8x8xf32>
    %2 = tpu.iota {dimensions = array<i32: 1>} : vector<8x64xi32>
    %c32_i32 = arith.constant 32 : i32
    %3 = vector.broadcast %c32_i32 : i32 to vector<8x64xi32>
    %4 = arith.cmpi slt, %2, %3 : vector<8x64xi32>
    %c0_1 = arith.constant 0 : index
    %c0_2 = arith.constant 0 : index
    %5 = vector.load %arg1[%c0_1, %c0_2] : memref<288x128xf32, #tpu.memory_space<vmem>>, vector<8x64xf32>
    %c72 = arith.constant 72 : index
    %c0_3 = arith.constant 0 : index
    %6 = vector.load %arg1[%c72, %c0_3] : memref<288x128xf32, #tpu.memory_space<vmem>>, vector<64x16xf32>
    %c136 = arith.constant 136 : index
    %c0_4 = arith.constant 0 : index
    %7 = vector.load %arg1[%c136, %c0_4] : memref<288x128xf32, #tpu.memory_space<vmem>>, vector<8x128xf32>
    %8 = vector.extract_strided_slice %7 {offsets = [0, 0], sizes = [1, 64], strides = [1, 1]} : vector<8x128xf32> to vector<1x64xf32>
    %9 = vector.extract_strided_slice %7 {offsets = [2, 0], sizes = [1, 16], strides = [1, 1]} : vector<8x128xf32> to vector<1x16xf32>
    %10 = vector.extract_strided_slice %7 {offsets = [3, 0], sizes = [1, 8], strides = [1, 1]} : vector<8x128xf32> to vector<1x8xf32>
    %11 = vector.extract_strided_slice %7 {offsets = [4, 0], sizes = [1, 8], strides = [1, 1]} : vector<8x128xf32> to vector<1x8xf32>
    %12 = vector.extract_strided_slice %7 {offsets = [5, 0], sizes = [1, 8], strides = [1, 1]} : vector<8x128xf32> to vector<1x8xf32>
    %13 = vector.extract_strided_slice %7 {offsets = [6, 0], sizes = [1, 8], strides = [1, 1]} : vector<8x128xf32> to vector<1x8xf32>
    %cst_5 = arith.constant 1.000000e+00 : f32
    %14 = vector.broadcast %cst_5 : f32 to vector<1x8xf32>
    %15 = arith.subf %14, %10 : vector<1x8xf32>
    %16 = vector.broadcast %10 : vector<1x8xf32> to vector<8x8xf32>
    %17 = arith.mulf %0, %16 : vector<8x8xf32>
    %cst_6 = arith.constant dense<0.000000e+00> : vector<8x64xf32>
    %18 = tpu.matmul %17, %5, %cst_6 {dimension_numbers = #tpu.dot_dimension_numbers<[1], [0], [0], [1], [0, 0, 1, 1], [], []>} : vector<8x8xf32>, vector<8x64xf32>, vector<8x64xf32> -> vector<8x64xf32>
    %19 = vector.broadcast %8 : vector<1x64xf32> to vector<8x64xf32>
    %20 = arith.addf %18, %19 : vector<8x64xf32>
    %c8 = arith.constant 8 : index
    %c0_7 = arith.constant 0 : index
    %21 = vector.load %arg1[%c8, %c0_7] : memref<288x128xf32, #tpu.memory_space<vmem>>, vector<64x64xf32>
    %22 = vector.extract_strided_slice %7 {offsets = [1, 0], sizes = [1, 64], strides = [1, 1]} : vector<8x128xf32> to vector<1x64xf32>
    %23 = math.tanh %20 : vector<8x64xf32>
    %cst_8 = arith.constant 0.000000e+00 : f32
    %24 = vector.broadcast %cst_8 : f32 to vector<8x64xf32>
    %25 = arith.maximumf %20, %24 : vector<8x64xf32>
    %26 = arith.select %4, %23, %25 : vector<8x64xi1>, vector<8x64xf32>
    %cst_9 = arith.constant dense<0.000000e+00> : vector<8x64xf32>
    %27 = tpu.matmul %26, %21, %cst_9 {dimension_numbers = #tpu.dot_dimension_numbers<[1], [0], [0], [1], [0, 0, 1, 1], [], []>} : vector<8x64xf32>, vector<64x64xf32>, vector<8x64xf32> -> vector<8x64xf32>
    %28 = vector.broadcast %22 : vector<1x64xf32> to vector<8x64xf32>
    %29 = arith.addf %27, %28 : vector<8x64xf32>
    %30 = math.tanh %29 : vector<8x64xf32>
    %cst_10 = arith.constant 0.000000e+00 : f32
    %31 = vector.broadcast %cst_10 : f32 to vector<8x64xf32>
    %32 = arith.maximumf %29, %31 : vector<8x64xf32>
    %33 = arith.select %4, %30, %32 : vector<8x64xi1>, vector<8x64xf32>
    %cst_11 = arith.constant dense<0.000000e+00> : vector<8x16xf32>
    %34 = tpu.matmul %33, %6, %cst_11 {dimension_numbers = #tpu.dot_dimension_numbers<[1], [0], [0], [1], [0, 0, 1, 1], [], []>} : vector<8x64xf32>, vector<64x16xf32>, vector<8x16xf32> -> vector<8x16xf32>
    %35 = vector.broadcast %9 : vector<1x16xf32> to vector<8x16xf32>
    %36 = arith.addf %34, %35 : vector<8x16xf32>
    %37 = vector.extract_strided_slice %36 {offsets = [0, 0], sizes = [8, 8], strides = [1, 1]} : vector<8x16xf32> to vector<8x8xf32>
    %38 = vector.extract_strided_slice %36 {offsets = [0, 8], sizes = [8, 8], strides = [1, 1]} : vector<8x16xf32> to vector<8x8xf32>
    %39 = arith.subf %0, %38 : vector<8x8xf32>
    %40 = vector.broadcast %15 : vector<1x8xf32> to vector<8x8xf32>
    %41 = arith.mulf %40, %39 : vector<8x8xf32>
    %cst_12 = arith.constant 0.000000e+00 : f32
    %42 = vector.broadcast %cst_12 : f32 to vector<8x8xf32>
    %43 = arith.subf %42, %37 : vector<8x8xf32>
    %44 = math.exp %43 : vector<8x8xf32>
    %45 = arith.mulf %41, %44 : vector<8x8xf32>
    %46 = arith.addf %17, %45 : vector<8x8xf32>
    %cst_13 = arith.constant 0.000000e+00 : f32
    %47 = vector.broadcast %cst_13 : f32 to vector<1x8xf32>
    %48 = arith.subf %47, %15 : vector<1x8xf32>
    %49 = vector.broadcast %48 : vector<1x8xf32> to vector<8x8xf32>
    %50 = arith.mulf %49, %37 : vector<8x8xf32>
    %51 = arith.addf %1, %50 : vector<8x8xf32>
    %cst_14 = arith.constant dense<0.000000e+00> : vector<8xf32>
    %52 = vector.multi_reduction <add>, %46, %cst_14 [0] : vector<8x8xf32> to vector<8xf32>
    %53 = vector.shape_cast %52 : vector<8xf32> to vector<1x8xf32>
    %cst_15 = arith.constant 8.000000e+00 : f32
    %54 = vector.broadcast %cst_15 : f32 to vector<1x8xf32>
    %55 = arith.divf %53, %54 : vector<1x8xf32>
    %56 = vector.broadcast %55 : vector<1x8xf32> to vector<8x8xf32>
    %57 = arith.subf %46, %56 : vector<8x8xf32>
    %58 = arith.mulf %57, %57 : vector<8x8xf32>
    %cst_16 = arith.constant dense<0.000000e+00> : vector<8xf32>
    %59 = vector.multi_reduction <add>, %58, %cst_16 [0] : vector<8x8xf32> to vector<8xf32>
    %60 = vector.shape_cast %59 : vector<8xf32> to vector<1x8xf32>
    %cst_17 = arith.constant 7.000000e+00 : f32
    %61 = vector.broadcast %cst_17 : f32 to vector<1x8xf32>
    %62 = arith.divf %60, %61 : vector<1x8xf32>
    %cst_18 = arith.constant 9.99999974E-6 : f32
    %63 = vector.broadcast %cst_18 : f32 to vector<1x8xf32>
    %64 = arith.addf %62, %63 : vector<1x8xf32>
    %65 = math.rsqrt %64 : vector<1x8xf32>
    %66 = vector.broadcast %55 : vector<1x8xf32> to vector<8x8xf32>
    %67 = arith.subf %46, %66 : vector<8x8xf32>
    %68 = vector.broadcast %65 : vector<1x8xf32> to vector<8x8xf32>
    %69 = arith.mulf %67, %68 : vector<8x8xf32>
    %70 = vector.broadcast %12 : vector<1x8xf32> to vector<8x8xf32>
    %71 = arith.mulf %70, %69 : vector<8x8xf32>
    %72 = vector.broadcast %13 : vector<1x8xf32> to vector<8x8xf32>
    %73 = arith.addf %71, %72 : vector<8x8xf32>
    %cst_19 = arith.constant 9.99999974E-6 : f32
    %74 = vector.broadcast %cst_19 : f32 to vector<1x8xf32>
    %75 = arith.addf %62, %74 : vector<1x8xf32>
    %76 = math.log %75 : vector<1x8xf32>
    %cst_20 = arith.constant 5.000000e-01 : f32
    %77 = vector.broadcast %cst_20 : f32 to vector<1x8xf32>
    %78 = arith.mulf %77, %76 : vector<1x8xf32>
    %79 = arith.subf %11, %78 : vector<1x8xf32>
    %80 = vector.broadcast %79 : vector<1x8xf32> to vector<8x8xf32>
    %81 = arith.addf %51, %80 : vector<8x8xf32>
    %c144 = arith.constant 144 : index
    %c0_21 = arith.constant 0 : index
    %82 = vector.load %arg1[%c144, %c0_21] : memref<288x128xf32, #tpu.memory_space<vmem>>, vector<8x64xf32>
    %c216 = arith.constant 216 : index
    %c0_22 = arith.constant 0 : index
    %83 = vector.load %arg1[%c216, %c0_22] : memref<288x128xf32, #tpu.memory_space<vmem>>, vector<64x16xf32>
    %c280 = arith.constant 280 : index
    %c0_23 = arith.constant 0 : index
    %84 = vector.load %arg1[%c280, %c0_23] : memref<288x128xf32, #tpu.memory_space<vmem>>, vector<8x128xf32>
    %85 = vector.extract_strided_slice %84 {offsets = [0, 0], sizes = [1, 64], strides = [1, 1]} : vector<8x128xf32> to vector<1x64xf32>
    %86 = vector.extract_strided_slice %84 {offsets = [2, 0], sizes = [1, 16], strides = [1, 1]} : vector<8x128xf32> to vector<1x16xf32>
    %87 = vector.extract_strided_slice %84 {offsets = [3, 0], sizes = [1, 8], strides = [1, 1]} : vector<8x128xf32> to vector<1x8xf32>
    %88 = vector.extract_strided_slice %84 {offsets = [4, 0], sizes = [1, 8], strides = [1, 1]} : vector<8x128xf32> to vector<1x8xf32>
    %89 = vector.extract_strided_slice %84 {offsets = [5, 0], sizes = [1, 8], strides = [1, 1]} : vector<8x128xf32> to vector<1x8xf32>
    %90 = vector.extract_strided_slice %84 {offsets = [6, 0], sizes = [1, 8], strides = [1, 1]} : vector<8x128xf32> to vector<1x8xf32>
    %cst_24 = arith.constant 1.000000e+00 : f32
    %91 = vector.broadcast %cst_24 : f32 to vector<1x8xf32>
    %92 = arith.subf %91, %87 : vector<1x8xf32>
    %93 = vector.broadcast %87 : vector<1x8xf32> to vector<8x8xf32>
    %94 = arith.mulf %73, %93 : vector<8x8xf32>
    %cst_25 = arith.constant dense<0.000000e+00> : vector<8x64xf32>
    %95 = tpu.matmul %94, %82, %cst_25 {dimension_numbers = #tpu.dot_dimension_numbers<[1], [0], [0], [1], [0, 0, 1, 1], [], []>} : vector<8x8xf32>, vector<8x64xf32>, vector<8x64xf32> -> vector<8x64xf32>
    %96 = vector.broadcast %85 : vector<1x64xf32> to vector<8x64xf32>
    %97 = arith.addf %95, %96 : vector<8x64xf32>
    %c152 = arith.constant 152 : index
    %c0_26 = arith.constant 0 : index
    %98 = vector.load %arg1[%c152, %c0_26] : memref<288x128xf32, #tpu.memory_space<vmem>>, vector<64x64xf32>
    %99 = vector.extract_strided_slice %84 {offsets = [1, 0], sizes = [1, 64], strides = [1, 1]} : vector<8x128xf32> to vector<1x64xf32>
    %100 = math.tanh %97 : vector<8x64xf32>
    %cst_27 = arith.constant 0.000000e+00 : f32
    %101 = vector.broadcast %cst_27 : f32 to vector<8x64xf32>
    %102 = arith.maximumf %97, %101 : vector<8x64xf32>
    %103 = arith.select %4, %100, %102 : vector<8x64xi1>, vector<8x64xf32>
    %cst_28 = arith.constant dense<0.000000e+00> : vector<8x64xf32>
    %104 = tpu.matmul %103, %98, %cst_28 {dimension_numbers = #tpu.dot_dimension_numbers<[1], [0], [0], [1], [0, 0, 1, 1], [], []>} : vector<8x64xf32>, vector<64x64xf32>, vector<8x64xf32> -> vector<8x64xf32>
    %105 = vector.broadcast %99 : vector<1x64xf32> to vector<8x64xf32>
    %106 = arith.addf %104, %105 : vector<8x64xf32>
    %107 = math.tanh %106 : vector<8x64xf32>
    %cst_29 = arith.constant 0.000000e+00 : f32
    %108 = vector.broadcast %cst_29 : f32 to vector<8x64xf32>
    %109 = arith.maximumf %106, %108 : vector<8x64xf32>
    %110 = arith.select %4, %107, %109 : vector<8x64xi1>, vector<8x64xf32>
    %cst_30 = arith.constant dense<0.000000e+00> : vector<8x16xf32>
    %111 = tpu.matmul %110, %83, %cst_30 {dimension_numbers = #tpu.dot_dimension_numbers<[1], [0], [0], [1], [0, 0, 1, 1], [], []>} : vector<8x64xf32>, vector<64x16xf32>, vector<8x16xf32> -> vector<8x16xf32>
    %112 = vector.broadcast %86 : vector<1x16xf32> to vector<8x16xf32>
    %113 = arith.addf %111, %112 : vector<8x16xf32>
    %114 = vector.extract_strided_slice %113 {offsets = [0, 0], sizes = [8, 8], strides = [1, 1]} : vector<8x16xf32> to vector<8x8xf32>
    %115 = vector.extract_strided_slice %113 {offsets = [0, 8], sizes = [8, 8], strides = [1, 1]} : vector<8x16xf32> to vector<8x8xf32>
    %116 = arith.subf %73, %115 : vector<8x8xf32>
    %117 = vector.broadcast %92 : vector<1x8xf32> to vector<8x8xf32>
    %118 = arith.mulf %117, %116 : vector<8x8xf32>
    %cst_31 = arith.constant 0.000000e+00 : f32
    %119 = vector.broadcast %cst_31 : f32 to vector<8x8xf32>
    %120 = arith.subf %119, %114 : vector<8x8xf32>
    %121 = math.exp %120 : vector<8x8xf32>
    %122 = arith.mulf %118, %121 : vector<8x8xf32>
    %123 = arith.addf %94, %122 : vector<8x8xf32>
    %cst_32 = arith.constant 0.000000e+00 : f32
    %124 = vector.broadcast %cst_32 : f32 to vector<1x8xf32>
    %125 = arith.subf %124, %92 : vector<1x8xf32>
    %126 = vector.broadcast %125 : vector<1x8xf32> to vector<8x8xf32>
    %127 = arith.mulf %126, %114 : vector<8x8xf32>
    %128 = arith.addf %81, %127 : vector<8x8xf32>
    %cst_33 = arith.constant dense<0.000000e+00> : vector<8xf32>
    %129 = vector.multi_reduction <add>, %123, %cst_33 [0] : vector<8x8xf32> to vector<8xf32>
    %130 = vector.shape_cast %129 : vector<8xf32> to vector<1x8xf32>
    %cst_34 = arith.constant 8.000000e+00 : f32
    %131 = vector.broadcast %cst_34 : f32 to vector<1x8xf32>
    %132 = arith.divf %130, %131 : vector<1x8xf32>
    %133 = vector.broadcast %132 : vector<1x8xf32> to vector<8x8xf32>
    %134 = arith.subf %123, %133 : vector<8x8xf32>
    %135 = arith.mulf %134, %134 : vector<8x8xf32>
    %cst_35 = arith.constant dense<0.000000e+00> : vector<8xf32>
    %136 = vector.multi_reduction <add>, %135, %cst_35 [0] : vector<8x8xf32> to vector<8xf32>
    %137 = vector.shape_cast %136 : vector<8xf32> to vector<1x8xf32>
    %cst_36 = arith.constant 7.000000e+00 : f32
    %138 = vector.broadcast %cst_36 : f32 to vector<1x8xf32>
    %139 = arith.divf %137, %138 : vector<1x8xf32>
    %cst_37 = arith.constant 9.99999974E-6 : f32
    %140 = vector.broadcast %cst_37 : f32 to vector<1x8xf32>
    %141 = arith.addf %139, %140 : vector<1x8xf32>
    %142 = math.rsqrt %141 : vector<1x8xf32>
    %143 = vector.broadcast %132 : vector<1x8xf32> to vector<8x8xf32>
    %144 = arith.subf %123, %143 : vector<8x8xf32>
    %145 = vector.broadcast %142 : vector<1x8xf32> to vector<8x8xf32>
    %146 = arith.mulf %144, %145 : vector<8x8xf32>
    %147 = vector.broadcast %89 : vector<1x8xf32> to vector<8x8xf32>
    %148 = arith.mulf %147, %146 : vector<8x8xf32>
    %149 = vector.broadcast %90 : vector<1x8xf32> to vector<8x8xf32>
    %150 = arith.addf %148, %149 : vector<8x8xf32>
    %cst_38 = arith.constant 9.99999974E-6 : f32
    %151 = vector.broadcast %cst_38 : f32 to vector<1x8xf32>
    %152 = arith.addf %139, %151 : vector<1x8xf32>
    %153 = math.log %152 : vector<1x8xf32>
    %cst_39 = arith.constant 5.000000e-01 : f32
    %154 = vector.broadcast %cst_39 : f32 to vector<1x8xf32>
    %155 = arith.mulf %154, %153 : vector<1x8xf32>
    %156 = arith.subf %88, %155 : vector<1x8xf32>
    %157 = vector.broadcast %156 : vector<1x8xf32> to vector<8x8xf32>
    %158 = arith.addf %128, %157 : vector<8x8xf32>
    %cst_40 = arith.constant 0.000000e+00 : f32
    %159 = vector.broadcast %cst_40 : f32 to vector<8x128xf32>
    %c0_41 = arith.constant 0 : index
    %c0_42 = arith.constant 0 : index
    %160 = vector.load %arg2[%c0_41, %c0_42] : memref<8x128xf32, #tpu.memory_space<vmem>>, vector<8x128xf32>
    tpu.vector_store %arg2[%c0_41, %c0_42], %159 {strides = array<i32>} : memref<8x128xf32, #tpu.memory_space<vmem>>, vector<8x128xf32>,
    %c0_43 = arith.constant 0 : index
    %c0_44 = arith.constant 0 : index
    %161 = vector.load %arg2[%c0_43, %c0_44] : memref<8x128xf32, #tpu.memory_space<vmem>>, vector<8x8xf32>
    tpu.vector_store %arg2[%c0_43, %c0_44], %150 {strides = array<i32>} : memref<8x128xf32, #tpu.memory_space<vmem>>, vector<8x8xf32>,
    %c0_45 = arith.constant 0 : index
    %c8_46 = arith.constant 8 : index
    %162 = vector.load %arg2[%c0_45, %c8_46] : memref<8x128xf32, #tpu.memory_space<vmem>>, vector<8x8xf32>
    tpu.vector_store %arg2[%c0_45, %c8_46], %158 {strides = array<i32>} : memref<8x128xf32, #tpu.memory_space<vmem>>, vector<8x8xf32>,
    return
  }
}

</mosaic_0001>

<llo_original>
// kernel: tpu_custom_call.1
$region0: #{tpu_custom_call.1}
  #allocation0 [shape = 'u32[]', space=smem, size = 0x4, offset = 0x4, fixed_abs, tag = 'smem constant byte address 0x4 - core index']
  #allocation1 [shape = 'u32[144,128]{1,0:T(1,128)}', space=vmem, size = 0x12000, scoped, tag = 'internal scratch']
  %s0 = inlined_call_operand.hbm [shape: f32[8,8], index: 0, kind: input, shape index: {}]
  %s1 = inlined_call_operand.hbm [shape: f32[288,128], index: 1, kind: input, shape index: {}]
  %s2 = inlined_call_operand.hbm [shape: f32[8,128], index: 2, kind: output, shape index: {}]
  %s3 = sld [smem:[#allocation0]]
  $region26: #{tpu_custom_call.1} parent=0
    _
  %s5 = ssub.s32 1, %s3
  %s6 = scalar_select 0, %s5, %s3
  $region1: #{tpu_custom_call.1} parent=0
    #allocation2 [shape = 'u8[4096]{0}', space=vmem, size = 0x1000, scoped, tag = 'input window, operand 0, single buffered']
    #allocation3 [shape = 's32[1]{0}', space=sflag, size = 0x4, scoped, tag = 'scoped memory for tpu_custom_call.1']
    #allocation4 [shape = 's32[1]{0}', space=sflag, size = 0x4, scoped, tag = 'scoped memory for tpu_custom_call.1']
    #allocation5 [shape = 'u8[147456]{0}', space=vmem, size = 0x24000, scoped, tag = 'input window, operand 1, single buffered']
    #allocation6 [shape = 's32[1]{0}', space=sflag, size = 0x4, scoped, tag = 'scoped memory for tpu_custom_call.1']
    #allocation7 [shape = 'u8[4096]{0}', space=vmem, size = 0x1000, scoped, tag = 'output window, operand 0, single buffered']
    %7 = vsyncpa [#allocation3], 0
    %8 = vsyncpa [#allocation6], 0
    %9 = vsyncpa [#allocation4], 0
    // Predicated region
    $region2: #{tpu_custom_call.1} parent=1 // pred_check
      _
    $region3: #{tpu_custom_call.1} parent=1 // pred_check_branch
      %11 = sbr.rel (0) target = $region5
    $region4: #{tpu_custom_call.1} parent=1 // pred_region
      %s13 = ssub.s32 128, 128
      %14 = vsyncadd [#allocation3], %s13
      %s16 = sshll.u32 [#allocation2], 4
      %s17 = int_to_ptr.vmem [resolvable:$true] %s16
      %19 = dma.hbm_to_vmem [thread:$0]  %s0, 128, %s17, [#allocation3]
    $region5: #{tpu_custom_call.1} parent=1 // pred_fallthru
      _
    // Predicated region
    $region6: #{tpu_custom_call.1} parent=1 // pred_check
      _
    $region7: #{tpu_custom_call.1} parent=1 // pred_check_branch
      %21 = sbr.rel (0) target = $region9
    $region8: #{tpu_custom_call.1} parent=1 // pred_region
      %s23 = ssub.s32 4608, 4608
      %24 = vsyncadd [#allocation6], %s23
      %s25 = sshll.u32 [#allocation5], 4
      %s26 = int_to_ptr.vmem [resolvable:$true] %s25
      %31 = dma.hbm_to_vmem [thread:$0]  %s1, 4608, %s26, [#allocation6], 128, 128, 8
    $region9: #{tpu_custom_call.1} parent=1 // pred_fallthru
      _
    // Predicated region
    $region10: #{tpu_custom_call.1} parent=1 // pred_check
      _
    $region11: #{tpu_custom_call.1} parent=1 // pred_check_branch
      %33 = sbr.rel (0) target = $region13
    $region12: #{tpu_custom_call.1} parent=1 // pred_region
      %34 = dma.done [#allocation3], 128
    $region13: #{tpu_custom_call.1} parent=1 // pred_fallthru
      _
    // Predicated region
    $region14: #{tpu_custom_call.1} parent=1 // pred_check
      _
    $region15: #{tpu_custom_call.1} parent=1 // pred_check_branch
      %36 = sbr.rel (0) target = $region17
    $region16: #{tpu_custom_call.1} parent=1 // pred_region
      %37 = dma.done [#allocation6], 4608
    $region17: #{tpu_custom_call.1} parent=1 // pred_fallthru
      _
    %v38 = vld [vmem:[#allocation2] sm:$0xff]
    %v39 = vlaneseq
    %v40 = vand.u32 %v39, 127
    %vm41 = vcmp.lt.s32.totalorder %v40, 32
    %v42 = vld [vmem:[#allocation5] sm:$0xff]
    %v43 = vld [vmem:[#allocation5 + $0x48] sm:$0xff]
    %v44 = vld [vmem:[#allocation5 + $0x50] sm:$0xff]
    %v45 = vld [vmem:[#allocation5 + $0x58] sm:$0xff]
    %v46 = vld [vmem:[#allocation5 + $0x60] sm:$0xff]
    %v47 = vld [vmem:[#allocation5 + $0x68] sm:$0xff]
    %v48 = vld [vmem:[#allocation5 + $0x70] sm:$0xff]
    %v49 = vld [vmem:[#allocation5 + $0x78] sm:$0xff]
    %v50 = vld [vmem:[#allocation5 + $0x80] sm:$0xff]
    %v51 = vld [vmem:[#allocation5 + $0x88] sm:$0xff]
    %v52 = vsub.f32 1.0, %v51
    %v53 = vlaneseq
    %v54 = vshrl.u32 %v53, 7
    %v55 = vsub.s32 3, %v54
    %v56 = vrot.slane %v51, %v55
    %v57 = vmul.f32 %v38, %v56
    %v58 = vlaneseq
    %v59 = vshrl.u32 %v58, 7
    %v60 = vsub.s32 0, %v59
    %v61 = vrot.slane %v51, %v60
    %vm62 = vcmask 64512
    %v64 = vsel %vm62, %v57, 0
    %66 = vmatprep.subr.mxu0 0.0
    %67 = vmatpush1.msra.mxu0 0.0
    %68 = vmatprep.subr.mxu0 0.0
    %69 = vmatpush1.msra.mxu0 0.0
    %70 = vmatprep.subr.mxu0 0.0
    %71 = vmatpush1.msra.mxu0 0.0
    %72 = vmatprep.subr.mxu0 0.0
    %73 = vmatpush1.msra.mxu0 0.0
    %74 = vmatprep.subr.mxu0 0.0
    %75 = vmatpush1.msra.mxu0 0.0
    %76 = vmatprep.subr.mxu0 0.0
    %77 = vmatpush1.msra.mxu0 0.0
    %78 = vmatprep.subr.mxu0 0.0
    %79 = vmatpush1.msra.mxu0 0.0
    %80 = vmatprep.subr.mxu0 0.0
    %81 = vmatpush1.msra.mxu0 0.0
    %82 = vmatprep.subr.mxu0 0.0
    %83 = vmatpush1.msra.mxu0 0.0
    %84 = vmatprep.subr.mxu0 0.0
    %85 = vmatpush1.msra.mxu0 0.0
    %86 = vmatprep.subr.mxu0 0.0
    %87 = vmatpush1.msra.mxu0 0.0
    %88 = vmatprep.subr.mxu0 0.0
    %89 = vmatpush1.msra.mxu0 0.0
    %90 = vmatprep.subr.mxu0 0.0
    %91 = vmatpush1.msra.mxu0 0.0
    %92 = vmatprep.subr.mxu0 0.0
    %93 = vmatpush1.msra.mxu0 0.0
    %94 = vmatprep.subr.mxu0 0.0
    %95 = vmatpush1.msra.mxu0 0.0
    %96 = vmatprep.subr.mxu0 0.0
    %97 = vmatpush1.msra.mxu0 %v42
    %98 = vmatprep.subr.mxu0 0.0
    %99 = vmatpush2.msra.mxu0 0.0
    %100 = vmatprep.subr.mxu0 0.0
    %101 = vmatpush2.msra.mxu0 0.0
    %102 = vmatprep.subr.mxu0 0.0
    %103 = vmatpush2.msra.mxu0 0.0
    %104 = vmatprep.subr.mxu0 0.0
    %105 = vmatpush2.msra.mxu0 0.0
    %106 = vmatprep.subr.mxu0 0.0
    %107 = vmatpush2.msra.mxu0 0.0
    %108 = vmatprep.subr.mxu0 0.0
    %109 = vmatpush2.msra.mxu0 0.0
    %110 = vmatprep.subr.mxu0 0.0
    %111 = vmatpush2.msra.mxu0 0.0
    %112 = vmatprep.subr.mxu0 0.0
    %113 = vmatpush2.msra.mxu0 0.0
    %114 = vmatprep.subr.mxu0 0.0
    %115 = vmatpush2.msra.mxu0 0.0
    %116 = vmatprep.subr.mxu0 0.0
    %117 = vmatpush2.msra.mxu0 0.0
    %118 = vmatprep.subr.mxu0 0.0
    %119 = vmatpush2.msra.mxu0 0.0
    %120 = vmatprep.subr.mxu0 0.0
    %121 = vmatpush2.msra.mxu0 0.0
    %122 = vmatprep.subr.mxu0 0.0
    %123 = vmatpush2.msra.mxu0 0.0
    %124 = vmatprep.subr.mxu0 0.0
    %125 = vmatpush2.msra.mxu0 0.0
    %126 = vmatprep.subr.mxu0 0.0
    %127 = vmatpush2.msra.mxu0 0.0
    %128 = vmatprep.subr.mxu0 0.0
    %129 = vmatpush2.msra.mxu0 0.0
    %130 = vmatprep.mubr.f32.mxu0 0.0
    %131 = vmatmul.mubr.f32.gmra.mxu0 %v64
    %v132 = vpop.f32.mrf.mxu0
    %v133 = vadd.f32 %v61, %v132
    %v134 = vpop.f32.mrf.mxu0
    %135 = vdwg.mxu0
    %v136 = vld [vmem:[#allocation5 + $0x8] sm:$0xff]
    %v137 = vld [vmem:[#allocation5 + $0x10] sm:$0xff]
    %v138 = vld [vmem:[#allocation5 + $0x18] sm:$0xff]
    %v139 = vld [vmem:[#allocation5 + $0x20] sm:$0xff]
    %v140 = vld [vmem:[#allocation5 + $0x28] sm:$0xff]
    %v141 = vld [vmem:[#allocation5 + $0x30] sm:$0xff]
    %v142 = vld [vmem:[#allocation5 + $0x38] sm:$0xff]
    %v143 = vld [vmem:[#allocation5 + $0x40] sm:$0xff]
    %v144 = vtanh.pop %v133
    %v145 = vmax.f32 %v133, 0.0
    %v146 = vsel %vm41, %v144, %v145
    %v147 = vlaneseq
    %v148 = vshrl.u32 %v147, 7
    %v149 = vsub.s32 1, %v148
    %v150 = vrot.slane %v51, %v149
    %vm151 = vcmask 523264
    %v153 = vsel %vm151, %v146, 0
    %155 = vmatprep.subr.mxu0 0.0
    %156 = vmatpush1.msra.mxu0 0.0
    %157 = vmatprep.subr.mxu0 0.0
    %158 = vmatpush1.msra.mxu0 0.0
    %159 = vmatprep.subr.mxu0 0.0
    %160 = vmatpush1.msra.mxu0 0.0
    %161 = vmatprep.subr.mxu0 0.0
    %162 = vmatpush1.msra.mxu0 0.0
    %163 = vmatprep.subr.mxu0 0.0
    %164 = vmatpush1.msra.mxu0 0.0
    %165 = vmatprep.subr.mxu0 0.0
    %166 = vmatpush1.msra.mxu0 0.0
    %167 = vmatprep.subr.mxu0 0.0
    %168 = vmatpush1.msra.mxu0 0.0
    %169 = vmatprep.subr.mxu0 0.0
    %170 = vmatpush1.msra.mxu0 0.0
    %171 = vmatprep.subr.mxu0 0.0
    %172 = vmatpush1.msra.mxu0 %v143
    %173 = vmatprep.subr.mxu0 0.0
    %174 = vmatpush1.msra.mxu0 %v142
    %175 = vmatprep.subr.mxu0 0.0
    %176 = vmatpush1.msra.mxu0 %v141
    %177 = vmatprep.subr.mxu0 0.0
    %178 = vmatpush1.msra.mxu0 %v140
    %179 = vmatprep.subr.mxu0 0.0
    %180 = vmatpush1.msra.mxu0 %v139
    %181 = vmatprep.subr.mxu0 0.0
    %182 = vmatpush1.msra.mxu0 %v138
    %183 = vmatprep.subr.mxu0 0.0
    %184 = vmatpush1.msra.mxu0 %v137
    %185 = vmatprep.subr.mxu0 0.0
    %186 = vmatpush1.msra.mxu0 %v136
    %187 = vmatprep.subr.mxu0 0.0
    %188 = vmatpush2.msra.mxu0 0.0
    %189 = vmatprep.subr.mxu0 0.0
    %190 = vmatpush2.msra.mxu0 0.0
    %191 = vmatprep.subr.mxu0 0.0
    %192 = vmatpush2.msra.mxu0 0.0
    %193 = vmatprep.subr.mxu0 0.0
    %194 = vmatpush2.msra.mxu0 0.0
    %195 = vmatprep.subr.mxu0 0.0
    %196 = vmatpush2.msra.mxu0 0.0
    %197 = vmatprep.subr.mxu0 0.0
    %198 = vmatpush2.msra.mxu0 0.0
    %199 = vmatprep.subr.mxu0 0.0
    %200 = vmatpush2.msra.mxu0 0.0
    %201 = vmatprep.subr.mxu0 0.0
    %202 = vmatpush2.msra.mxu0 0.0
    %203 = vmatprep.subr.mxu0 0.0
    %204 = vmatpush2.msra.mxu0 0.0
    %205 = vmatprep.subr.mxu0 0.0
    %206 = vmatpush2.msra.mxu0 0.0
    %207 = vmatprep.subr.mxu0 0.0
    %208 = vmatpush2.msra.mxu0 0.0
    %209 = vmatprep.subr.mxu0 0.0
    %210 = vmatpush2.msra.mxu0 0.0
    %211 = vmatprep.subr.mxu0 0.0
    %212 = vmatpush2.msra.mxu0 0.0
    %213 = vmatprep.subr.mxu0 0.0
    %214 = vmatpush2.msra.mxu0 0.0
    %215 = vmatprep.subr.mxu0 0.0
    %216 = vmatpush2.msra.mxu0 0.0
    %217 = vmatprep.subr.mxu0 0.0
    %218 = vmatpush2.msra.mxu0 0.0
    %219 = vmatprep.mubr.f32.mxu0 0.0
    %220 = vmatmul.mubr.f32.gmra.mxu0 %v153
    %v221 = vpop.f32.mrf.mxu0
    %v222 = vadd.f32 %v150, %v221
    %v223 = vpop.f32.mrf.mxu0
    %224 = vdwg.mxu0
    %v225 = vtanh.pop %v222
    %v226 = vmax.f32 %v222, 0.0
    %v227 = vsel %vm41, %v225, %v226
    %v228 = vlaneseq
    %v229 = vshrl.u32 %v228, 7
    %v230 = vsub.s32 2, %v229
    %v231 = vrot.slane %v51, %v230
    %v233 = vsel %vm151, %v227, 0
    %235 = vmatprep.subr.mxu0 0.0
    %236 = vmatpush1.msra.mxu0 0.0
    %237 = vmatprep.subr.mxu0 0.0
    %238 = vmatpush1.msra.mxu0 0.0
    %239 = vmatprep.subr.mxu0 0.0
    %240 = vmatpush1.msra.mxu0 0.0
    %241 = vmatprep.subr.mxu0 0.0
    %242 = vmatpush1.msra.mxu0 0.0
    %243 = vmatprep.subr.mxu0 0.0
    %244 = vmatpush1.msra.mxu0 0.0
    %245 = vmatprep.subr.mxu0 0.0
    %246 = vmatpush1.msra.mxu0 0.0
    %247 = vmatprep.subr.mxu0 0.0
    %248 = vmatpush1.msra.mxu0 0.0
    %249 = vmatprep.subr.mxu0 0.0
    %250 = vmatpush1.msra.mxu0 0.0
    %251 = vmatprep.subr.mxu0 0.0
    %252 = vmatpush1.msra.mxu0 %v50
    %253 = vmatprep.subr.mxu0 0.0
    %254 = vmatpush1.msra.mxu0 %v49
    %255 = vmatprep.subr.mxu0 0.0
    %256 = vmatpush1.msra.mxu0 %v48
    %257 = vmatprep.subr.mxu0 0.0
    %258 = vmatpush1.msra.mxu0 %v47
    %259 = vmatprep.subr.mxu0 0.0
    %260 = vmatpush1.msra.mxu0 %v46
    %261 = vmatprep.subr.mxu0 0.0
    %262 = vmatpush1.msra.mxu0 %v45
    %263 = vmatprep.subr.mxu0 0.0
    %264 = vmatpush1.msra.mxu0 %v44
    %265 = vmatprep.subr.mxu0 0.0
    %266 = vmatpush1.msra.mxu0 %v43
    %267 = vmatprep.subr.mxu0 0.0
    %268 = vmatpush2.msra.mxu0 0.0
    %269 = vmatprep.subr.mxu0 0.0
    %270 = vmatpush2.msra.mxu0 0.0
    %271 = vmatprep.subr.mxu0 0.0
    %272 = vmatpush2.msra.mxu0 0.0
    %273 = vmatprep.subr.mxu0 0.0
    %274 = vmatpush2.msra.mxu0 0.0
    %275 = vmatprep.subr.mxu0 0.0
    %276 = vmatpush2.msra.mxu0 0.0
    %277 = vmatprep.subr.mxu0 0.0
    %278 = vmatpush2.msra.mxu0 0.0
    %279 = vmatprep.subr.mxu0 0.0
    %280 = vmatpush2.msra.mxu0 0.0
    %281 = vmatprep.subr.mxu0 0.0
    %282 = vmatpush2.msra.mxu0 0.0
    %283 = vmatprep.subr.mxu0 0.0
    %284 = vmatpush2.msra.mxu0 0.0
    %285 = vmatprep.subr.mxu0 0.0
    %286 = vmatpush2.msra.mxu0 0.0
    %287 = vmatprep.subr.mxu0 0.0
    %288 = vmatpush2.msra.mxu0 0.0
    %289 = vmatprep.subr.mxu0 0.0
    %290 = vmatpush2.msra.mxu0 0.0
    %291 = vmatprep.subr.mxu0 0.0
    %292 = vmatpush2.msra.mxu0 0.0
    %293 = vmatprep.subr.mxu0 0.0
    %294 = vmatpush2.msra.mxu0 0.0
    %295 = vmatprep.subr.mxu0 0.0
    %296 = vmatpush2.msra.mxu0 0.0
    %297 = vmatprep.subr.mxu0 0.0
    %298 = vmatpush2.msra.mxu0 0.0
    %299 = vmatprep.mubr.f32.mxu0 0.0
    %300 = vmatmul.mubr.f32.gmra.mxu0 %v233
    %v301 = vpop.f32.mrf.mxu0
    %v302 = vadd.f32 %v231, %v301
    %v303 = vpop.f32.mrf.mxu0
    %304 = vdwg.mxu0
    %306 = vrot.lane.b32.xlu0 %v302, 120
    %v307 = vpop.permute.xlu0 %306
    %v309 = vsub.f32 %v38, %v307
    %v310 = vlaneseq
    %v311 = vshrl.u32 %v310, 7
    %v312 = vsub.s32 3, %v311
    %v313 = vrot.slane %v52, %v312
    %v314 = vmul.f32 %v313, %v309
    %v315 = vsub.f32 0.0, %v302
    %v316 = vmul.f32 %v315, 1.442695
    %v317 = vpow.pop %v316
    %v318 = vmul.f32 %v314, %v317
    %v319 = vadd.f32 %v57, %v318
    %v320 = vsub.f32 0.0, %v52
    %v321 = vlaneseq
    %v322 = vshrl.u32 %v321, 7
    %v323 = vsub.s32 3, %v322
    %v324 = vrot.slane %v320, %v323
    %v325 = vmul.f32 %v324, %v302
    %v326 = vadd.f32 %v325, 0.0
    %v327 = vsel %vm62, %v319, 0.0
    %v328 = vrot.slane %v327, 4
    %v329 = vadd.f32 %v327, %v328
    %v330 = vrot.slane %v329, 2
    %v331 = vadd.f32 %v329, %v330
    %v332 = vrot.slane %v331, 1
    %v333 = vadd.f32 %v331, %v332
    %v334 = vrcp.pop 8.0
    %v335 = vmul.f32 %v333, %v334
    %v336 = vsub.f32 %v319, %v335
    %v337 = vmul.f32 %v336, %v336
    %v338 = vsel %vm62, %v337, 0.0
    %v339 = vrot.slane %v338, 4
    %v340 = vadd.f32 %v338, %v339
    %v341 = vrot.slane %v340, 2
    %v342 = vadd.f32 %v340, %v341
    %v343 = vrot.slane %v342, 1
    %v344 = vadd.f32 %v342, %v343
    %v345 = vrcp.pop 7.0
    %v346 = vmul.f32 %v344, %v345
    %v347 = vadd.f32 %v346, 1e-05
    %v348 = vrsqrt.pop %v347
    %v349 = vmul.f32 %v336, %v348
    %v350 = vlaneseq
    %v351 = vshrl.u32 %v350, 7
    %v352 = vsub.s32 5, %v351
    %v353 = vrot.slane %v51, %v352
    %v354 = vmul.f32 %v353, %v349
    %v355 = vlaneseq
    %v356 = vshrl.u32 %v355, 7
    %v357 = vsub.s32 6, %v356
    %v358 = vrot.slane %v51, %v357
    %v359 = vadd.f32 %v354, %v358
    %v360 = vlog2.pop %v347
    %v361 = vmul.f32 %v360, 0.6931472
    %v362 = vmul.f32 %v361, 0.5
    %v363 = vsub.f32 %v51, %v362
    %v364 = vlaneseq
    %v365 = vshrl.u32 %v364, 7
    %v366 = vsub.s32 4, %v365
    %v367 = vrot.slane %v363, %v366
    %v368 = vadd.f32 %v326, %v367
    %v369 = vld [vmem:[#allocation5 + $0x90] sm:$0xff]
    %v370 = vld [vmem:[#allocation5 + $0xd8] sm:$0xff]
    %v371 = vld [vmem:[#allocation5 + $0xe0] sm:$0xff]
    %v372 = vld [vmem:[#allocation5 + $0xe8] sm:$0xff]
    %v373 = vld [vmem:[#allocation5 + $0xf0] sm:$0xff]
    %v374 = vld [vmem:[#allocation5 + $0xf8] sm:$0xff]
    %v375 = vld [vmem:[#allocation5 + $0x100] sm:$0xff]
    %v376 = vld [vmem:[#allocation5 + $0x108] sm:$0xff]
    %v377 = vld [vmem:[#allocation5 + $0x110] sm:$0xff]
    %v378 = vld [vmem:[#allocation5 + $0x118] sm:$0xff]
    %v379 = vsub.f32 1.0, %v378
    %v380 = vlaneseq
    %v381 = vshrl.u32 %v380, 7
    %v382 = vsub.s32 3, %v381
    %v383 = vrot.slane %v378, %v382
    %v384 = vmul.f32 %v359, %v383
    %v385 = vlaneseq
    %v386 = vshrl.u32 %v385, 7
    %v387 = vsub.s32 0, %v386
    %v388 = vrot.slane %v378, %v387
    %v390 = vsel %vm62, %v384, 0
    %392 = vmatprep.subr.mxu0 0.0
    %393 = vmatpush1.msra.mxu0 0.0
    %394 = vmatprep.subr.mxu0 0.0
    %395 = vmatpush1.msra.mxu0 0.0
    %396 = vmatprep.subr.mxu0 0.0
    %397 = vmatpush1.msra.mxu0 0.0
    %398 = vmatprep.subr.mxu0 0.0
    %399 = vmatpush1.msra.mxu0 0.0
    %400 = vmatprep.subr.mxu0 0.0
    %401 = vmatpush1.msra.mxu0 0.0
    %402 = vmatprep.subr.mxu0 0.0
    %403 = vmatpush1.msra.mxu0 0.0
    %404 = vmatprep.subr.mxu0 0.0
    %405 = vmatpush1.msra.mxu0 0.0
    %406 = vmatprep.subr.mxu0 0.0
    %407 = vmatpush1.msra.mxu0 0.0
    %408 = vmatprep.subr.mxu0 0.0
    %409 = vmatpush1.msra.mxu0 0.0
    %410 = vmatprep.subr.mxu0 0.0
    %411 = vmatpush1.msra.mxu0 0.0
    %412 = vmatprep.subr.mxu0 0.0
    %413 = vmatpush1.msra.mxu0 0.0
    %414 = vmatprep.subr.mxu0 0.0
    %415 = vmatpush1.msra.mxu0 0.0
    %416 = vmatprep.subr.mxu0 0.0
    %417 = vmatpush1.msra.mxu0 0.0
    %418 = vmatprep.subr.mxu0 0.0
    %419 = vmatpush1.msra.mxu0 0.0
    %420 = vmatprep.subr.mxu0 0.0
    %421 = vmatpush1.msra.mxu0 0.0
    %422 = vmatprep.subr.mxu0 0.0
    %423 = vmatpush1.msra.mxu0 %v369
    %424 = vmatprep.subr.mxu0 0.0
    %425 = vmatpush2.msra.mxu0 0.0
    %426 = vmatprep.subr.mxu0 0.0
    %427 = vmatpush2.msra.mxu0 0.0
    %428 = vmatprep.subr.mxu0 0.0
    %429 = vmatpush2.msra.mxu0 0.0
    %430 = vmatprep.subr.mxu0 0.0
    %431 = vmatpush2.msra.mxu0 0.0
    %432 = vmatprep.subr.mxu0 0.0
    %433 = vmatpush2.msra.mxu0 0.0
    %434 = vmatprep.subr.mxu0 0.0
    %435 = vmatpush2.msra.mxu0 0.0
    %436 = vmatprep.subr.mxu0 0.0
    %437 = vmatpush2.msra.mxu0 0.0
    %438 = vmatprep.subr.mxu0 0.0
    %439 = vmatpush2.msra.mxu0 0.0
    %440 = vmatprep.subr.mxu0 0.0
    %441 = vmatpush2.msra.mxu0 0.0
    %442 = vmatprep.subr.mxu0 0.0
    %443 = vmatpush2.msra.mxu0 0.0
    %444 = vmatprep.subr.mxu0 0.0
    %445 = vmatpush2.msra.mxu0 0.0
    %446 = vmatprep.subr.mxu0 0.0
    %447 = vmatpush2.msra.mxu0 0.0
    %448 = vmatprep.subr.mxu0 0.0
    %449 = vmatpush2.msra.mxu0 0.0
    %450 = vmatprep.subr.mxu0 0.0
    %451 = vmatpush2.msra.mxu0 0.0
    %452 = vmatprep.subr.mxu0 0.0
    %453 = vmatpush2.msra.mxu0 0.0
    %454 = vmatprep.subr.mxu0 0.0
    %455 = vmatpush2.msra.mxu0 0.0
    %456 = vmatprep.mubr.f32.mxu0 0.0
    %457 = vmatmul.mubr.f32.gmra.mxu0 %v390
    %v458 = vpop.f32.mrf.mxu0
    %v459 = vadd.f32 %v388, %v458
    %v460 = vpop.f32.mrf.mxu0
    %461 = vdwg.mxu0
    %v462 = vld [vmem:[#allocation5 + $0x98] sm:$0xff]
    %v463 = vld [vmem:[#allocation5 + $0xa0] sm:$0xff]
    %v464 = vld [vmem:[#allocation5 + $0xa8] sm:$0xff]
    %v465 = vld [vmem:[#allocation5 + $0xb0] sm:$0xff]
    %v466 = vld [vmem:[#allocation5 + $0xb8] sm:$0xff]
    %v467 = vld [vmem:[#allocation5 + $0xc0] sm:$0xff]
    %v468 = vld [vmem:[#allocation5 + $0xc8] sm:$0xff]
    %v469 = vld [vmem:[#allocation5 + $0xd0] sm:$0xff]
    %v470 = vtanh.pop %v459
    %v471 = vmax.f32 %v459, 0.0
    %v472 = vsel %vm41, %v470, %v471
    %v473 = vlaneseq
    %v474 = vshrl.u32 %v473, 7
    %v475 = vsub.s32 1, %v474
    %v476 = vrot.slane %v378, %v475
    %v478 = vsel %vm151, %v472, 0
    %480 = vmatprep.subr.mxu0 0.0
    %481 = vmatpush1.msra.mxu0 0.0
    %482 = vmatprep.subr.mxu0 0.0
    %483 = vmatpush1.msra.mxu0 0.0
    %484 = vmatprep.subr.mxu0 0.0
    %485 = vmatpush1.msra.mxu0 0.0
    %486 = vmatprep.subr.mxu0 0.0
    %487 = vmatpush1.msra.mxu0 0.0
    %488 = vmatprep.subr.mxu0 0.0
    %489 = vmatpush1.msra.mxu0 0.0
    %490 = vmatprep.subr.mxu0 0.0
    %491 = vmatpush1.msra.mxu0 0.0
    %492 = vmatprep.subr.mxu0 0.0
    %493 = vmatpush1.msra.mxu0 0.0
    %494 = vmatprep.subr.mxu0 0.0
    %495 = vmatpush1.msra.mxu0 0.0
    %496 = vmatprep.subr.mxu0 0.0
    %497 = vmatpush1.msra.mxu0 %v469
    %498 = vmatprep.subr.mxu0 0.0
    %499 = vmatpush1.msra.mxu0 %v468
    %500 = vmatprep.subr.mxu0 0.0
    %501 = vmatpush1.msra.mxu0 %v467
    %502 = vmatprep.subr.mxu0 0.0
    %503 = vmatpush1.msra.mxu0 %v466
    %504 = vmatprep.subr.mxu0 0.0
    %505 = vmatpush1.msra.mxu0 %v465
    %506 = vmatprep.subr.mxu0 0.0
    %507 = vmatpush1.msra.mxu0 %v464
    %508 = vmatprep.subr.mxu0 0.0
    %509 = vmatpush1.msra.mxu0 %v463
    %510 = vmatprep.subr.mxu0 0.0
    %511 = vmatpush1.msra.mxu0 %v462
    %512 = vmatprep.subr.mxu0 0.0
    %513 = vmatpush2.msra.mxu0 0.0
    %514 = vmatprep.subr.mxu0 0.0
    %515 = vmatpush2.msra.mxu0 0.0
    %516 = vmatprep.subr.mxu0 0.0
    %517 = vmatpush2.msra.mxu0 0.0
    %518 = vmatprep.subr.mxu0 0.0
    %519 = vmatpush2.msra.mxu0 0.0
    %520 = vmatprep.subr.mxu0 0.0
    %521 = vmatpush2.msra.mxu0 0.0
    %522 = vmatprep.subr.mxu0 0.0
    %523 = vmatpush2.msra.mxu0 0.0
    %524 = vmatprep.subr.mxu0 0.0
    %525 = vmatpush2.msra.mxu0 0.0
    %526 = vmatprep.subr.mxu0 0.0
    %527 = vmatpush2.msra.mxu0 0.0
    %528 = vmatprep.subr.mxu0 0.0
    %529 = vmatpush2.msra.mxu0 0.0
    %530 = vmatprep.subr.mxu0 0.0
    %531 = vmatpush2.msra.mxu0 0.0
    %532 = vmatprep.subr.mxu0 0.0
    %533 = vmatpush2.msra.mxu0 0.0
    %534 = vmatprep.subr.mxu0 0.0
    %535 = vmatpush2.msra.mxu0 0.0
    %536 = vmatprep.subr.mxu0 0.0
    %537 = vmatpush2.msra.mxu0 0.0
    %538 = vmatprep.subr.mxu0 0.0
    %539 = vmatpush2.msra.mxu0 0.0
    %540 = vmatprep.subr.mxu0 0.0
    %541 = vmatpush2.msra.mxu0 0.0
    %542 = vmatprep.subr.mxu0 0.0
    %543 = vmatpush2.msra.mxu0 0.0
    %544 = vmatprep.mubr.f32.mxu0 0.0
    %545 = vmatmul.mubr.f32.gmra.mxu0 %v478
    %v546 = vpop.f32.mrf.mxu0
    %v547 = vadd.f32 %v476, %v546
    %v548 = vpop.f32.mrf.mxu0
    %549 = vdwg.mxu0
    %v550 = vtanh.pop %v547
    %v551 = vmax.f32 %v547, 0.0
    %v552 = vsel %vm41, %v550, %v551
    %v553 = vlaneseq
    %v554 = vshrl.u32 %v553, 7
    %v555 = vsub.s32 2, %v554
    %v556 = vrot.slane %v378, %v555
    %v558 = vsel %vm151, %v552, 0
    %560 = vmatprep.subr.mxu0 0.0
    %561 = vmatpush1.msra.mxu0 0.0
    %562 = vmatprep.subr.mxu0 0.0
    %563 = vmatpush1.msra.mxu0 0.0
    %564 = vmatprep.subr.mxu0 0.0
    %565 = vmatpush1.msra.mxu0 0.0
    %566 = vmatprep.subr.mxu0 0.0
    %567 = vmatpush1.msra.mxu0 0.0
    %568 = vmatprep.subr.mxu0 0.0
    %569 = vmatpush1.msra.mxu0 0.0
    %570 = vmatprep.subr.mxu0 0.0
    %571 = vmatpush1.msra.mxu0 0.0
    %572 = vmatprep.subr.mxu0 0.0
    %573 = vmatpush1.msra.mxu0 0.0
    %574 = vmatprep.subr.mxu0 0.0
    %575 = vmatpush1.msra.mxu0 0.0
    %576 = vmatprep.subr.mxu0 0.0
    %577 = vmatpush1.msra.mxu0 %v377
    %578 = vmatprep.subr.mxu0 0.0
    %579 = vmatpush1.msra.mxu0 %v376
    %580 = vmatprep.subr.mxu0 0.0
    %581 = vmatpush1.msra.mxu0 %v375
    %582 = vmatprep.subr.mxu0 0.0
    %583 = vmatpush1.msra.mxu0 %v374
    %584 = vmatprep.subr.mxu0 0.0
    %585 = vmatpush1.msra.mxu0 %v373
    %586 = vmatprep.subr.mxu0 0.0
    %587 = vmatpush1.msra.mxu0 %v372
    %588 = vmatprep.subr.mxu0 0.0
    %589 = vmatpush1.msra.mxu0 %v371
    %590 = vmatprep.subr.mxu0 0.0
    %591 = vmatpush1.msra.mxu0 %v370
    %592 = vmatprep.subr.mxu0 0.0
    %593 = vmatpush2.msra.mxu0 0.0
    %594 = vmatprep.subr.mxu0 0.0
    %595 = vmatpush2.msra.mxu0 0.0
    %596 = vmatprep.subr.mxu0 0.0
    %597 = vmatpush2.msra.mxu0 0.0
    %598 = vmatprep.subr.mxu0 0.0
    %599 = vmatpush2.msra.mxu0 0.0
    %600 = vmatprep.subr.mxu0 0.0
    %601 = vmatpush2.msra.mxu0 0.0
    %602 = vmatprep.subr.mxu0 0.0
    %603 = vmatpush2.msra.mxu0 0.0
    %604 = vmatprep.subr.mxu0 0.0
    %605 = vmatpush2.msra.mxu0 0.0
    %606 = vmatprep.subr.mxu0 0.0
    %607 = vmatpush2.msra.mxu0 0.0
    %608 = vmatprep.subr.mxu0 0.0
    %609 = vmatpush2.msra.mxu0 0.0
    %610 = vmatprep.subr.mxu0 0.0
    %611 = vmatpush2.msra.mxu0 0.0
    %612 = vmatprep.subr.mxu0 0.0
    %613 = vmatpush2.msra.mxu0 0.0
    %614 = vmatprep.subr.mxu0 0.0
    %615 = vmatpush2.msra.mxu0 0.0
    %616 = vmatprep.subr.mxu0 0.0
    %617 = vmatpush2.msra.mxu0 0.0
    %618 = vmatprep.subr.mxu0 0.0
    %619 = vmatpush2.msra.mxu0 0.0
    %620 = vmatprep.subr.mxu0 0.0
    %621 = vmatpush2.msra.mxu0 0.0
    %622 = vmatprep.subr.mxu0 0.0
    %623 = vmatpush2.msra.mxu0 0.0
    %624 = vmatprep.mubr.f32.mxu0 0.0
    %625 = vmatmul.mubr.f32.gmra.mxu0 %v558
    %v626 = vpop.f32.mrf.mxu0
    %v627 = vadd.f32 %v556, %v626
    %v628 = vpop.f32.mrf.mxu0
    %629 = vdwg.mxu0
    %631 = vrot.lane.b32.xlu0 %v627, 120
    %v632 = vpop.permute.xlu0 %631
    %v634 = vsub.f32 %v359, %v632
    %v635 = vlaneseq
    %v636 = vshrl.u32 %v635, 7
    %v637 = vsub.s32 3, %v636
    %v638 = vrot.slane %v379, %v637
    %v639 = vmul.f32 %v638, %v634
    %v640 = vsub.f32 0.0, %v627
    %v641 = vmul.f32 %v640, 1.442695
    %v642 = vpow.pop %v641
    %v643 = vmul.f32 %v639, %v642
    %v644 = vadd.f32 %v384, %v643
    %v645 = vsub.f32 0.0, %v379
    %v646 = vlaneseq
    %v647 = vshrl.u32 %v646, 7
    %v648 = vsub.s32 3, %v647
    %v649 = vrot.slane %v645, %v648
    %v650 = vmul.f32 %v649, %v627
    %v651 = vadd.f32 %v368, %v650
    %v652 = vsel %vm62, %v644, 0.0
    %v653 = vrot.slane %v652, 4
    %v654 = vadd.f32 %v652, %v653
    %v655 = vrot.slane %v654, 2
    %v656 = vadd.f32 %v654, %v655
    %v657 = vrot.slane %v656, 1
    %v658 = vadd.f32 %v656, %v657
    %v659 = vmul.f32 %v658, %v334
    %v660 = vsub.f32 %v644, %v659
    %v661 = vmul.f32 %v660, %v660
    %v662 = vsel %vm62, %v661, 0.0
    %v663 = vrot.slane %v662, 4
    %v664 = vadd.f32 %v662, %v663
    %v665 = vrot.slane %v664, 2
    %v666 = vadd.f32 %v664, %v665
    %v667 = vrot.slane %v666, 1
    %v668 = vadd.f32 %v666, %v667
    %v669 = vmul.f32 %v668, %v345
    %v670 = vadd.f32 %v669, 1e-05
    %v671 = vrsqrt.pop %v670
    %v672 = vmul.f32 %v660, %v671
    %v673 = vlaneseq
    %v674 = vshrl.u32 %v673, 7
    %v675 = vsub.s32 5, %v674
    %v676 = vrot.slane %v378, %v675
    %v677 = vmul.f32 %v676, %v672
    %v678 = vlaneseq
    %v679 = vshrl.u32 %v678, 7
    %v680 = vsub.s32 6, %v679
    %v681 = vrot.slane %v378, %v680
    %v682 = vadd.f32 %v677, %v681
    %v683 = vlog2.pop %v670
    %v684 = vmul.f32 %v683, 0.6931472
    %v685 = vmul.f32 %v684, 0.5
    %v686 = vsub.f32 %v378, %v685
    %v687 = vlaneseq
    %v688 = vshrl.u32 %v687, 7
    %v689 = vsub.s32 4, %v688
    %v690 = vrot.slane %v686, %v689
    %v691 = vadd.f32 %v651, %v690
    %692 = vst [vmem:[#allocation7] sm:$0xff] 0.0
    %693 = vst.msk [vmem:[#allocation7] sm:$0xff] %vm62, %v682
    %695 = vrot.lane.b32.xlu0 %v691, 8
    %v696 = vpop.permute.xlu0 %695
    %vm698 = vcmask 130112
    %699 = vst.msk [vmem:[#allocation7] sm:$0xff] %vm698, %v696
    // Predicated region
    $region18: #{tpu_custom_call.1} parent=1 // pred_check
      _
    $region19: #{tpu_custom_call.1} parent=1 // pred_check_branch
      %701 = sbr.rel (0) target = $region21
    $region20: #{tpu_custom_call.1} parent=1 // pred_region
      %s703 = ssub.s32 128, 128
      %704 = vsyncadd [#allocation4], %s703
      %s706 = sshll.u32 [#allocation7], 4
      %s707 = int_to_ptr.vmem [resolvable:$true] %s706
      %709 = dma.vmem_to_hbm [thread:$0]  %s707, 128, %s2, [#allocation4]
    $region21: #{tpu_custom_call.1} parent=1 // pred_fallthru
      _
    // Predicated region
    $region22: #{tpu_custom_call.1} parent=1 // pred_check
      _
    $region23: #{tpu_custom_call.1} parent=1 // pred_check_branch
      %711 = sbr.rel (0) target = $region25
    $region24: #{tpu_custom_call.1} parent=1 // pred_region
      %712 = dma.done [#allocation4], 128
    $region25: #{tpu_custom_call.1} parent=1 // pred_fallthru
      _
    %713 = vsyncpa [#allocation3], 1
    %714 = vsyncpa [#allocation6], 1
    %715 = vsyncpa [#allocation4], 1

</llo_original>
